<compile_context>
chip_gen: v5e
topology: v5e:2x2
jax: 0.10.0
libtpu: 0.0.40
codegen_flags: <defaults>
</compile_context>

<pallas_src>
import functools

import jax
import jax.numpy as jnp
from jax.experimental import pallas as pl
from jax.experimental.pallas import tpu as pltpu


# ----------------------------- Pallas kernel --------------------------------
def _mlp_fused_kernel(*refs, n_layers: int):
    """Fused MLP: refs = (x, w0, b0, w1, b1, ..., w_{L-1}, b_{L-1}, out).

    Hidden layers: y = tanh(x @ w + b); final layer: y = x @ w + b.
    All intermediates live in vregs / VMEM — nothing goes back to HBM.
    """
    x_ref = refs[0]
    o_ref = refs[-1]
    wb_refs = refs[1:-1]

    h = x_ref[...].astype(jnp.float32)
    for i in range(n_layers):
        w = wb_refs[2 * i][...].astype(jnp.float32)
        b = wb_refs[2 * i + 1][...].astype(jnp.float32)
        # MXU matmul, f32 accumulate; bias add on the VPU, tanh on the EUP —
        # both hide under the matmul push slots.
        h = jnp.dot(h, w, preferred_element_type=jnp.float32) + b
        if i < n_layers - 1:
            h = jnp.tanh(h)
    o_ref[...] = h.astype(o_ref.dtype)


# ------------------------------ MLP wrapper ----------------------------------
def init_mlp_params(key, input_dim, output_dim, layer_list, dtype=jnp.float32):
    """Xavier-normal weights (matching nn.init.xavier_normal_),
    PyTorch-Linear-style uniform bias init. Weights stored (D_in, D_out)."""
    dims = [input_dim] + list(layer_list) + [output_dim]
    params = []
    for i in range(len(dims) - 1):
        fan_in, fan_out = dims[i], dims[i + 1]
        key, kw, kb = jax.random.split(key, 3)
        std = (2.0 / (fan_in + fan_out)) ** 0.5
        w = std * jax.random.normal(kw, (fan_in, fan_out), dtype)
        bound = 1.0 / (fan_in ** 0.5)
        b = jax.random.uniform(kb, (1, fan_out), dtype, -bound, bound)
        params.append((w, b))
    return params


def mlp_forward(params, inp, *, tile_n: int = 512):
    """Matches MLP.forward. Accepts (..., input_dim); flattens to 2-D, runs the
    single fused Pallas kernel, reshapes back."""
    reshape_flag = False
    orig_shape = inp.shape
    if inp.ndim > 2:
        inp = inp.reshape(-1, inp.shape[-1])
        reshape_flag = True

    n, d_in = inp.shape
    n_layers = len(params)
    d_out = params[-1][0].shape[1]

    # Row tile: full array for small N (single block, no grid overhead);
    # otherwise a sublane-aligned tile so the grid double-buffers row DMAs.
    if n <= tile_n:
        tile_n = n
    else:
        tile_n = max(8, (tile_n // 8) * 8)
    grid = (pl.cdiv(n, tile_n),)

    # x is tiled over rows; weights/biases use a constant index_map so they are
    # fetched once and stay resident in VMEM across all grid steps.
    in_specs = [pl.BlockSpec((tile_n, d_in), lambda i: (i, 0))]
    flat_wb = []
    for (w, b) in params:
        di, do = w.shape
        flat_wb += [w, b]
        in_specs.append(pl.BlockSpec((di, do), lambda i: (0, 0)))
        in_specs.append(pl.BlockSpec((1, do), lambda i: (0, 0)))

    # Advisory cost estimate so XLA schedules this tiny custom call tightly.
    itemsize = jnp.dtype(inp.dtype).itemsize
    flops = 0
    transcendentals = 0
    bytes_accessed = (n * d_in + n * d_out) * itemsize
    for i, (w, b) in enumerate(params):
        di, do = w.shape
        flops += 2 * n * di * do + n * do
        if i < n_layers - 1:
            transcendentals += n * do
        bytes_accessed += (w.size + b.size) * jnp.dtype(w.dtype).itemsize

    out = pl.pallas_call(
        functools.partial(_mlp_fused_kernel, n_layers=n_layers),
        out_shape=jax.ShapeDtypeStruct((n, d_out), inp.dtype),
        grid=grid,
        in_specs=in_specs,
        out_specs=pl.BlockSpec((tile_n, d_out), lambda i: (i, 0)),
        compiler_params=pltpu.CompilerParams(
            # Rows are embarrassingly parallel -> v7x can split across its 2 TCs.
            dimension_semantics=("parallel",),
            # Tiny footprint; 32 MiB keeps headroom on every generation
            # (v7x physical VMEM is only 64 MiB).
            vmem_limit_bytes=32 * 1024 * 1024,
        ),
        cost_estimate=pl.CostEstimate(
            flops=flops,
            transcendentals=transcendentals,
            bytes_accessed=bytes_accessed,
        ),
    )(inp, *flat_wb)

    if reshape_flag:
        out = out.reshape(*orig_shape[:-1], -1)
    return out


# pure-JAX reference for sanity checking
def mlp_reference(params, inp):
    shape = inp.shape
    x = inp.reshape(-1, shape[-1])
    n_layers = len(params)
    for i, (w, b) in enumerate(params):
        x = x @ w + b
        if i < n_layers - 1:
            x = jnp.tanh(x)
    return x.reshape(*shape[:-1], -1)


if __name__ == "__main__":
    key = jax.random.PRNGKey(0)
    key, k_in = jax.random.split(key)

    # Small shapes consistent with the module's docstring:
    # inp: (num_seq, num_steps, input_dim) -> flattened (num_seq*num_steps, input_dim)
    num_seq, num_steps = 2, 8
    input_dim, output_dim = 16, 8
    layer_list = [32, 32]

    params = init_mlp_params(key, input_dim, output_dim, layer_list)
    x = jax.random.normal(k_in, (num_seq, num_steps, input_dim), jnp.float32)

    ref = mlp_reference(params, x)

    # 1) Default path: single full-row block (grid of 1), fully fused.
    out = jax.block_until_ready(mlp_forward(params, x))
    assert out.shape == (num_seq, num_steps, output_dim), out.shape
    assert jnp.allclose(out, ref, atol=1e-5, rtol=1e-5), "mismatch (full block)"

    # 2) Gridded path (tile_n=8 -> grid of 2 over rows), exercises the
    #    row-parallel pipeline used for large N.
    out_tiled = jax.block_until_ready(mlp_forward(params, x, tile_n=8))
    assert jnp.allclose(out_tiled, ref, atol=1e-5, rtol=1e-5), "mismatch (tiled)"

    print("KERNEL_OK")
</pallas_src>

<mosaic_0001>
module attributes {stable_mosaic.version = 11 : i64} {
  func.func @_mlp_fused_kernel(%arg0: i32, %arg1: memref<16x16xf32, #tpu.memory_space<vmem>>, %arg2: memref<16x32xf32, #tpu.memory_space<vmem>>, %arg3: memref<1x32xf32, #tpu.memory_space<vmem>>, %arg4: memref<32x32xf32, #tpu.memory_space<vmem>>, %arg5: memref<1x32xf32, #tpu.memory_space<vmem>>, %arg6: memref<32x8xf32, #tpu.memory_space<vmem>>, %arg7: memref<1x8xf32, #tpu.memory_space<vmem>>, %arg8: memref<16x8xf32, #tpu.memory_space<vmem>>) attributes {dimension_semantics = [#tpu.dimension_semantics<parallel>], iteration_bounds = array<i64: 1>, scalar_prefetch = 0 : i64, scratch_operands = 0 : i64, tpu.core_type = #tpu.core_type<tc>, window_params = [{transform_indices = @transform_0, window_bounds = array<i64: 16, 16>}, {pipeline_mode = #tpu.pipeline_mode<synchronous>, transform_indices = @transform_1, window_bounds = array<i64: 16, 32>}, {pipeline_mode = #tpu.pipeline_mode<synchronous>, transform_indices = @transform_2, window_bounds = array<i64: 1, 32>}, {pipeline_mode = #tpu.pipeline_mode<synchronous>, transform_indices = @transform_3, window_bounds = array<i64: 32, 32>}, {pipeline_mode = #tpu.pipeline_mode<synchronous>, transform_indices = @transform_4, window_bounds = array<i64: 1, 32>}, {pipeline_mode = #tpu.pipeline_mode<synchronous>, transform_indices = @transform_5, window_bounds = array<i64: 32, 8>}, {pipeline_mode = #tpu.pipeline_mode<synchronous>, transform_indices = @transform_6, window_bounds = array<i64: 1, 8>}, {transform_indices = @transform_7, window_bounds = array<i64: 16, 8>}]} {
    %c0 = arith.constant 0 : index
    %c0_0 = arith.constant 0 : index
    %0 = vector.load %arg1[%c0, %c0_0] : memref<16x16xf32, #tpu.memory_space<vmem>>, vector<16x16xf32>
    %c0_1 = arith.constant 0 : index
    %c0_2 = arith.constant 0 : index
    %1 = vector.load %arg2[%c0_1, %c0_2] : memref<16x32xf32, #tpu.memory_space<vmem>>, vector<16x32xf32>
    %c0_3 = arith.constant 0 : index
    %c0_4 = arith.constant 0 : index
    %2 = vector.load %arg3[%c0_3, %c0_4] : memref<1x32xf32, #tpu.memory_space<vmem>>, vector<1x32xf32>
    %cst = arith.constant dense<0.000000e+00> : vector<16x32xf32>
    %3 = tpu.matmul %0, %1, %cst {dimension_numbers = #tpu.dot_dimension_numbers<[1], [0], [0], [1], [0, 0, 1, 1], [], []>} : vector<16x16xf32>, vector<16x32xf32>, vector<16x32xf32> -> vector<16x32xf32>
    %4 = vector.broadcast %2 : vector<1x32xf32> to vector<16x32xf32>
    %5 = arith.addf %3, %4 : vector<16x32xf32>
    %6 = math.tanh %5 : vector<16x32xf32>
    %c0_5 = arith.constant 0 : index
    %c0_6 = arith.constant 0 : index
    %7 = vector.load %arg4[%c0_5, %c0_6] : memref<32x32xf32, #tpu.memory_space<vmem>>, vector<32x32xf32>
    %c0_7 = arith.constant 0 : index
    %c0_8 = arith.constant 0 : index
    %8 = vector.load %arg5[%c0_7, %c0_8] : memref<1x32xf32, #tpu.memory_space<vmem>>, vector<1x32xf32>
    %cst_9 = arith.constant dense<0.000000e+00> : vector<16x32xf32>
    %9 = tpu.matmul %6, %7, %cst_9 {dimension_numbers = #tpu.dot_dimension_numbers<[1], [0], [0], [1], [0, 0, 1, 1], [], []>} : vector<16x32xf32>, vector<32x32xf32>, vector<16x32xf32> -> vector<16x32xf32>
    %10 = vector.broadcast %8 : vector<1x32xf32> to vector<16x32xf32>
    %11 = arith.addf %9, %10 : vector<16x32xf32>
    %12 = math.tanh %11 : vector<16x32xf32>
    %c0_10 = arith.constant 0 : index
    %c0_11 = arith.constant 0 : index
    %13 = vector.load %arg6[%c0_10, %c0_11] : memref<32x8xf32, #tpu.memory_space<vmem>>, vector<32x8xf32>
    %c0_12 = arith.constant 0 : index
    %c0_13 = arith.constant 0 : index
    %14 = vector.load %arg7[%c0_12, %c0_13] : memref<1x8xf32, #tpu.memory_space<vmem>>, vector<1x8xf32>
    %cst_14 = arith.constant dense<0.000000e+00> : vector<16x8xf32>
    %15 = tpu.matmul %12, %13, %cst_14 {dimension_numbers = #tpu.dot_dimension_numbers<[1], [0], [0], [1], [0, 0, 1, 1], [], []>} : vector<16x32xf32>, vector<32x8xf32>, vector<16x8xf32> -> vector<16x8xf32>
    %16 = vector.broadcast %14 : vector<1x8xf32> to vector<16x8xf32>
    %17 = arith.addf %15, %16 : vector<16x8xf32>
    %c0_15 = arith.constant 0 : index
    %c0_16 = arith.constant 0 : index
    %18 = vector.load %arg8[%c0_15, %c0_16] : memref<16x8xf32, #tpu.memory_space<vmem>>, vector<16x8xf32>
    tpu.vector_store %arg8[%c0_15, %c0_16], %17 {strides = array<i32>} : memref<16x8xf32, #tpu.memory_space<vmem>>, vector<16x8xf32>,
    return
  }
  func.func @transform_0(%arg0: i32) -> (i32, i32) {
    %c0_i32 = arith.constant 0 : i32
    %c0_i32_0 = arith.constant 0 : i32
    return %arg0, %c0_i32 : i32, i32
  }
  func.func @transform_1(%arg0: i32) -> (i32, i32) {
    %c0_i32 = arith.constant 0 : i32
    %c0_i32_0 = arith.constant 0 : i32
    %c0_i32_1 = arith.constant 0 : i32
    return %c0_i32, %c0_i32_0 : i32, i32
  }
  func.func @transform_2(%arg0: i32) -> (i32, i32) {
    %c0_i32 = arith.constant 0 : i32
    %c0_i32_0 = arith.constant 0 : i32
    %c0_i32_1 = arith.constant 0 : i32
    return %c0_i32, %c0_i32_0 : i32, i32
  }
  func.func @transform_3(%arg0: i32) -> (i32, i32) {
    %c0_i32 = arith.constant 0 : i32
    %c0_i32_0 = arith.constant 0 : i32
    %c0_i32_1 = arith.constant 0 : i32
    return %c0_i32, %c0_i32_0 : i32, i32
  }
  func.func @transform_4(%arg0: i32) -> (i32, i32) {
    %c0_i32 = arith.constant 0 : i32
    %c0_i32_0 = arith.constant 0 : i32
    %c0_i32_1 = arith.constant 0 : i32
    return %c0_i32, %c0_i32_0 : i32, i32
  }
  func.func @transform_5(%arg0: i32) -> (i32, i32) {
    %c0_i32 = arith.constant 0 : i32
    %c0_i32_0 = arith.constant 0 : i32
    %c0_i32_1 = arith.constant 0 : i32
    return %c0_i32, %c0_i32_0 : i32, i32
  }
  func.func @transform_6(%arg0: i32) -> (i32, i32) {
    %c0_i32 = arith.constant 0 : i32
    %c0_i32_0 = arith.constant 0 : i32
    %c0_i32_1 = arith.constant 0 : i32
    return %c0_i32, %c0_i32_0 : i32, i32
  }
  func.func @transform_7(%arg0: i32) -> (i32, i32) {
    %c0_i32 = arith.constant 0 : i32
    %c0_i32_0 = arith.constant 0 : i32
    return %arg0, %c0_i32 : i32, i32
  }
}

</mosaic_0001>

<llo_original>
// kernel: tpu_custom_call.1
$region0: #{tpu_custom_call.1}
  #allocation0 [shape = 'u32[]', space=smem, size = 0x4, offset = 0x4, fixed_abs, tag = 'smem constant byte address 0x4 - core index']
  #allocation1 [shape = 'u32[72,128]{1,0:T(1,128)}', space=vmem, size = 0x9000, scoped, tag = 'internal scratch']
  %s0 = inlined_call_operand.hbm [shape: f32[16,16], index: 0, kind: input, shape index: {}]
  %s1 = inlined_call_operand.hbm [shape: f32[16,32], index: 1, kind: input, shape index: {}]
  %s2 = inlined_call_operand.vmem [shape: f32[1,32], index: 2, kind: input, shape index: {}]
  %s3 = inlined_call_operand.vmem [shape: f32[32,32], index: 3, kind: input, shape index: {}]
  %s4 = inlined_call_operand.vmem [shape: f32[1,32], index: 4, kind: input, shape index: {}]
  %s5 = inlined_call_operand.vmem [shape: f32[32,8], index: 5, kind: input, shape index: {}]
  %s6 = inlined_call_operand.vmem [shape: f32[1,8], index: 6, kind: input, shape index: {}]
  %s7 = inlined_call_operand.vmem [shape: f32[16,8], index: 7, kind: output, shape index: {}]
  %s8 = sld [smem:[#allocation0]]
  $region46: #{tpu_custom_call.1} parent=0
    _
  %s10 = ssub.s32 1, %s8
  %s11 = scalar_select 0, %s10, %s8
  $region1: #{tpu_custom_call.1} parent=0
    #allocation2 [shape = 'u8[8192]{0}', space=vmem, size = 0x2000, scoped, tag = 'input window, operand 0, single buffered']
    #allocation3 [shape = 's32[1]{0}', space=sflag, size = 0x4, scoped, tag = 'scoped memory for tpu_custom_call.1']
    #allocation4 [shape = 'u8[8192]{0}', space=vmem, size = 0x2000, scoped, tag = 'input window, operand 1, single buffered']
    #allocation5 [shape = 's32[1]{0}', space=sflag, size = 0x4, scoped, tag = 'scoped memory for tpu_custom_call.1']
    %12 = vsyncpa [#allocation3], 0
    %13 = vsyncpa [#allocation5], 0
    // Predicated region
    $region2: #{tpu_custom_call.1} parent=1 // pred_check
      _
    $region3: #{tpu_custom_call.1} parent=1 // pred_check_branch
      %15 = sbr.rel (0) target = $region5
    $region4: #{tpu_custom_call.1} parent=1 // pred_region
      %17 = vsyncadd [#allocation3], 0
      %s18 = sshll.u32 %s0, 4
      %s19 = int_to_ptr.hbm [resolvable:$true] %s18
      %s20 = sshll.u32 [#allocation2], 4
      %s21 = int_to_ptr.vmem [resolvable:$true] %s20
      %26 = dma.hbm_to_vmem [thread:$0]  %s19, 256, %s21, [#allocation3], 128, 128, 8
    $region5: #{tpu_custom_call.1} parent=1 // pred_fallthru
      _
    // Predicated region
    $region6: #{tpu_custom_call.1} parent=1 // pred_check
      _
    $region7: #{tpu_custom_call.1} parent=1 // pred_check_branch
      %28 = sbr.rel (0) target = $region9
    $region8: #{tpu_custom_call.1} parent=1 // pred_region
      %30 = vsyncadd [#allocation5], 0
      %s31 = sshll.u32 %s1, 4
      %s32 = int_to_ptr.hbm [resolvable:$true] %s31
      %s33 = sshll.u32 [#allocation4], 4
      %s34 = int_to_ptr.vmem [resolvable:$true] %s33
      %39 = dma.hbm_to_vmem [thread:$0]  %s32, 256, %s34, [#allocation5], 128, 128, 8
    $region9: #{tpu_custom_call.1} parent=1 // pred_fallthru
      _
    // Predicated region
    $region10: #{tpu_custom_call.1} parent=1 // pred_check
      _
    $region11: #{tpu_custom_call.1} parent=1 // pred_check_branch
      %41 = sbr.rel (0) target = $region13
    $region12: #{tpu_custom_call.1} parent=1 // pred_region
      _
    $region13: #{tpu_custom_call.1} parent=1 // pred_fallthru
      _
    // Predicated region
    $region14: #{tpu_custom_call.1} parent=1 // pred_check
      _
    $region15: #{tpu_custom_call.1} parent=1 // pred_check_branch
      %43 = sbr.rel (0) target = $region17
    $region16: #{tpu_custom_call.1} parent=1 // pred_region
      _
    $region17: #{tpu_custom_call.1} parent=1 // pred_fallthru
      _
    // Predicated region
    $region18: #{tpu_custom_call.1} parent=1 // pred_check
      _
    $region19: #{tpu_custom_call.1} parent=1 // pred_check_branch
      %45 = sbr.rel (0) target = $region21
    $region20: #{tpu_custom_call.1} parent=1 // pred_region
      _
    $region21: #{tpu_custom_call.1} parent=1 // pred_fallthru
      _
    // Predicated region
    $region22: #{tpu_custom_call.1} parent=1 // pred_check
      _
    $region23: #{tpu_custom_call.1} parent=1 // pred_check_branch
      %47 = sbr.rel (0) target = $region25
    $region24: #{tpu_custom_call.1} parent=1 // pred_region
      _
    $region25: #{tpu_custom_call.1} parent=1 // pred_fallthru
      _
    // Predicated region
    $region26: #{tpu_custom_call.1} parent=1 // pred_check
      _
    $region27: #{tpu_custom_call.1} parent=1 // pred_check_branch
      %49 = sbr.rel (0) target = $region29
    $region28: #{tpu_custom_call.1} parent=1 // pred_region
      _
    $region29: #{tpu_custom_call.1} parent=1 // pred_fallthru
      _
    // Predicated region
    $region30: #{tpu_custom_call.1} parent=1 // pred_check
      _
    $region31: #{tpu_custom_call.1} parent=1 // pred_check_branch
      %51 = sbr.rel (0) target = $region33
    $region32: #{tpu_custom_call.1} parent=1 // pred_region
      %53 = dma.done [#allocation3], 256
    $region33: #{tpu_custom_call.1} parent=1 // pred_fallthru
      _
    // Predicated region
    $region34: #{tpu_custom_call.1} parent=1 // pred_check
      _
    $region35: #{tpu_custom_call.1} parent=1 // pred_check_branch
      %55 = sbr.rel (0) target = $region37
    $region36: #{tpu_custom_call.1} parent=1 // pred_region
      %57 = dma.done [#allocation5], 256
    $region37: #{tpu_custom_call.1} parent=1 // pred_fallthru
      _
    %v58 = vld [vmem:[#allocation2] sm:$0xff]
    %v59 = vld [vmem:[#allocation2 + $0x8] sm:$0xff]
    %v60 = vld [vmem:[#allocation4] sm:$0xff]
    %v61 = vld [vmem:[#allocation4 + $0x8] sm:$0xff]
    %v62 = vld [vmem:[%s2] sm:$0x1]
    %v64 = vperm.slane %v62, 0
    %vm66 = vcmask 130048
    %v68 = vsel %vm66, %v58, 0
    %v71 = vsel %vm66, %v59, 0
    %73 = vmatpush.msra.mxu0 0.0
    %74 = vmatpush.msra.mxu0 0.0
    %75 = vmatpush.msra.mxu0 0.0
    %76 = vmatpush.msra.mxu0 0.0
    %77 = vmatpush.msra.mxu0 0.0
    %78 = vmatpush.msra.mxu0 0.0
    %79 = vmatpush.msra.mxu0 0.0
    %80 = vmatpush.msra.mxu0 0.0
    %81 = vmatpush.msra.mxu0 0.0
    %82 = vmatpush.msra.mxu0 0.0
    %83 = vmatpush.msra.mxu0 0.0
    %84 = vmatpush.msra.mxu0 0.0
    %85 = vmatpush.msra.mxu0 0.0
    %86 = vmatpush.msra.mxu0 0.0
    %87 = vmatpush.msra.mxu0 %v61
    %88 = vmatpush.msra.mxu0 %v60
    %89 = vmatmul.f32.gmra.mxu0 %v68
    %v90 = vpop.f32.mrf.mxu0
    %v91 = vadd.f32 %v64, %v90
    %92 = vmatmul.f32.gmra.mxu0 %v71
    %v93 = vpop.f32.mrf.mxu0
    %v94 = vadd.f32 %v64, %v93
    %95 = vdwg.mxu0
    %v96 = vtanh.pop %v91
    %v97 = vtanh.pop %v94
    %v98 = vld [vmem:[%s3] sm:$0xff]
    %v99 = vld [vmem:[%s3 + $0x8] sm:$0xff]
    %v100 = vld [vmem:[%s3 + $0x10] sm:$0xff]
    %v101 = vld [vmem:[%s3 + $0x18] sm:$0xff]
    %v102 = vld [vmem:[%s4] sm:$0x1]
    %v104 = vperm.slane %v102, 0
    %vm106 = vcmask 261120
    %v108 = vsel %vm106, %v96, 0
    %v111 = vsel %vm106, %v97, 0
    %113 = vmatpush.msra.mxu0 0.0
    %114 = vmatpush.msra.mxu0 0.0
    %115 = vmatpush.msra.mxu0 0.0
    %116 = vmatpush.msra.mxu0 0.0
    %117 = vmatpush.msra.mxu0 0.0
    %118 = vmatpush.msra.mxu0 0.0
    %119 = vmatpush.msra.mxu0 0.0
    %120 = vmatpush.msra.mxu0 0.0
    %121 = vmatpush.msra.mxu0 0.0
    %122 = vmatpush.msra.mxu0 0.0
    %123 = vmatpush.msra.mxu0 0.0
    %124 = vmatpush.msra.mxu0 0.0
    %125 = vmatpush.msra.mxu0 %v101
    %126 = vmatpush.msra.mxu0 %v100
    %127 = vmatpush.msra.mxu0 %v99
    %128 = vmatpush.msra.mxu0 %v98
    %129 = vmatmul.f32.gmra.mxu0 %v108
    %v130 = vpop.f32.mrf.mxu0
    %v131 = vadd.f32 %v104, %v130
    %132 = vmatmul.f32.gmra.mxu0 %v111
    %v133 = vpop.f32.mrf.mxu0
    %v134 = vadd.f32 %v104, %v133
    %135 = vdwg.mxu0
    %v136 = vtanh.pop %v131
    %v137 = vtanh.pop %v134
    %v138 = vld [vmem:[%s5] sm:$0xff]
    %v139 = vld [vmem:[%s5 + $0x8] sm:$0xff]
    %v140 = vld [vmem:[%s5 + $0x10] sm:$0xff]
    %v141 = vld [vmem:[%s5 + $0x18] sm:$0xff]
    %v142 = vld [vmem:[%s6] sm:$0x1]
    %v144 = vperm.slane %v142, 0
    %v147 = vsel %vm106, %v136, 0
    %v150 = vsel %vm106, %v137, 0
    %152 = vmatpush.msra.mxu0 0.0
    %153 = vmatpush.msra.mxu0 0.0
    %154 = vmatpush.msra.mxu0 0.0
    %155 = vmatpush.msra.mxu0 0.0
    %156 = vmatpush.msra.mxu0 0.0
    %157 = vmatpush.msra.mxu0 0.0
    %158 = vmatpush.msra.mxu0 0.0
    %159 = vmatpush.msra.mxu0 0.0
    %160 = vmatpush.msra.mxu0 0.0
    %161 = vmatpush.msra.mxu0 0.0
    %162 = vmatpush.msra.mxu0 0.0
    %163 = vmatpush.msra.mxu0 0.0
    %164 = vmatpush.msra.mxu0 %v141
    %165 = vmatpush.msra.mxu0 %v140
    %166 = vmatpush.msra.mxu0 %v139
    %167 = vmatpush.msra.mxu0 %v138
    %168 = vmatmul.f32.gmra.mxu0 %v147
    %v169 = vpop.f32.mrf.mxu0
    %v170 = vadd.f32 %v144, %v169
    %171 = vmatmul.f32.gmra.mxu0 %v150
    %v172 = vpop.f32.mrf.mxu0
    %v173 = vadd.f32 %v144, %v172
    %174 = vdwg.mxu0
    %vm175 = vcmask 64512
    %176 = vst.msk [vmem:[%s7] sm:$0xff] %vm175, %v170
    %177 = vst.msk [vmem:[%s7 + $0x8] sm:$0xff] %vm175, %v173
    // Predicated region
    $region38: #{tpu_custom_call.1} parent=1 // pred_check
      _
    $region39: #{tpu_custom_call.1} parent=1 // pred_check_branch
      %179 = sbr.rel (0) target = $region41
    $region40: #{tpu_custom_call.1} parent=1 // pred_region
      _
    $region41: #{tpu_custom_call.1} parent=1 // pred_fallthru
      _
    // Predicated region
    $region42: #{tpu_custom_call.1} parent=1 // pred_check
      _
    $region43: #{tpu_custom_call.1} parent=1 // pred_check_branch
      %181 = sbr.rel (0) target = $region45
    $region44: #{tpu_custom_call.1} parent=1 // pred_region
      _
    $region45: #{tpu_custom_call.1} parent=1 // pred_fallthru
      _
    %182 = vsyncpa [#allocation3], 1
    %183 = vsyncpa [#allocation5], 1

</llo_original>
